<compile_context>
chip_gen: v7x
topology: tpu7x:2x2x1
jax: 0.10.0
libtpu: 0.0.40
codegen_flags: <defaults>
</compile_context>

<pallas_src>
import functools

import jax
import jax.numpy as jnp
from jax.experimental import pallas as pl
from jax.experimental.pallas import tpu as pltpu

HIDDEN = 16                      # conv1 output width (fixed by the module)
LANES = 128                      # TPU lane width
NEG = -1e30                      # mask value for padded class columns
FUSED_MAX_N_PAD = 2048           # bf16 Â <= 8 MiB -> whole graph resident in VMEM
VMEM_LIMIT = 48 * 1024 * 1024    # <= v7x physical (64 MiB); ample on v5e/v6e


# --------------------------------------------------------------------------
# kernels
# --------------------------------------------------------------------------
def gcn_fused_kernel(adj_ref, xw_ref, w2_ref, b1_ref, b2_ref, o_ref, *, out_size):
    """Whole-graph fused path: Â resident in VMEM, read from HBM once."""
    adj = adj_ref[...]                                               # (n_pad, n_pad) bf16
    acc1 = jnp.dot(adj, xw_ref[...], preferred_element_type=jnp.float32)   # Â @ XW
    h = jnp.maximum(acc1 + b1_ref[...], 0.0)                         # ReLU (+ dropout = id)
    hw = jnp.dot(h.astype(jnp.bfloat16), w2_ref[...],
                 preferred_element_type=jnp.float32)                 # (n_pad, cp)
    acc2 = jnp.dot(adj, hw.astype(jnp.bfloat16),
                   preferred_element_type=jnp.float32)               # Â @ HW
    logits = acc2 + b2_ref[...]
    col = jax.lax.broadcasted_iota(jnp.int32, logits.shape, 1)
    logits = jnp.where(col < out_size, logits, NEG)                  # mask padded classes
    m = jnp.max(logits, axis=1, keepdims=True)
    z = logits - m
    lse = jnp.log(jnp.sum(jnp.exp(z), axis=1, keepdims=True))
    o_ref[...] = (z - lse).astype(o_ref.dtype)


def gcn_layer1_kernel(adj_ref, xw_ref, w2_ref, b1_ref, hw_ref, acc_ref):
    """HW[i] = relu( sum_k Â[i,k] @ XW[k] + b1 ) @ W2  (lane-dense bf16 output)."""
    k = pl.program_id(1)

    @pl.when(k == 0)
    def _():
        acc_ref[...] = jnp.zeros_like(acc_ref)

    # bf16 x bf16 -> f32 accumulate; XW is precomputed so nothing else moves per step.
    acc_ref[...] += jnp.dot(adj_ref[...], xw_ref[...],
                            preferred_element_type=jnp.float32)

    @pl.when(k == pl.num_programs(1) - 1)
    def _():
        # NOTE: padded rows become relu(b1) @ W2, but Â's padded *columns* are zero
        # so they never contribute in layer 2.
        h = jnp.maximum(acc_ref[...] + b1_ref[...], 0.0)             # ReLU (+ dropout = id)
        hw = jnp.dot(h.astype(jnp.bfloat16), w2_ref[...],
                     preferred_element_type=jnp.float32)
        hw_ref[...] = hw.astype(hw_ref.dtype)                        # (tm, cp) bf16, 128-lane dense


def gcn_layer2_kernel(adj_ref, hw_ref, b2_ref, o_ref, acc_ref, *, out_size):
    """out[i] = log_softmax( sum_k Â[i,k] @ HW[k] + b2 ), classes padded to 128."""
    k = pl.program_id(1)

    @pl.when(k == 0)
    def _():
        acc_ref[...] = jnp.zeros_like(acc_ref)

    acc_ref[...] += jnp.dot(adj_ref[...], hw_ref[...],
                            preferred_element_type=jnp.float32)

    @pl.when(k == pl.num_programs(1) - 1)
    def _():
        logits = acc_ref[...] + b2_ref[...]
        col = jax.lax.broadcasted_iota(jnp.int32, logits.shape, 1)
        logits = jnp.where(col < out_size, logits, NEG)              # mask padded classes
        m = jnp.max(logits, axis=1, keepdims=True)
        z = logits - m
        lse = jnp.log(jnp.sum(jnp.exp(z), axis=1, keepdims=True))
        o_ref[...] = (z - lse).astype(o_ref.dtype)


# --------------------------------------------------------------------------
# wrapper
# --------------------------------------------------------------------------
def _round_up(v, m):
    return (v + m - 1) // m * m


def _tiled_shapes(n):
    """Tiling for the large-graph (two-call) path: big Â tiles, rows parallel."""
    n_pad = _round_up(max(n, 512), 512)
    tm = 512
    for tk in (2048, 1024, 512):          # largest k-tile that divides n_pad
        if n_pad % tk == 0:
            return n_pad, tm, tk
    return n_pad, tm, 512                 # unreachable (n_pad % 512 == 0)


def normalized_adjacency_padded(edge_index, num_nodes, n_pad, dtype=jnp.bfloat16):
    """D^{-1/2}(A+I)D^{-1/2}, built directly padded to (n_pad, n_pad) and cast once."""
    # TODO(synk): for large / genuinely sparse graphs, replace this dense O(N^2)
    # densification with a scalar-prefetched block-sparse gather formulation.
    src, dst = edge_index[0], edge_index[1]
    loop = jnp.arange(num_nodes, dtype=edge_index.dtype)
    src = jnp.concatenate([src, loop])
    dst = jnp.concatenate([dst, loop])
    a = jnp.zeros((n_pad, n_pad), jnp.float32).at[dst, src].add(1.0)
    deg = jnp.sum(a, axis=1)
    dinv = jnp.where(deg > 0, jax.lax.rsqrt(deg), 0.0)    # padded rows/cols -> 0
    return (dinv[:, None] * a * dinv[None, :]).astype(dtype)


@jax.jit
def gcn_forward(edge_index, x, w1, b1, w2, b2):
    n, _ = x.shape
    c = w2.shape[1]
    cp = _round_up(c, LANES)                              # lane-dense class dim

    fused = _round_up(n, LANES) <= FUSED_MAX_N_PAD
    if fused:
        n_pad, tm, tk = _round_up(n, LANES), None, None
    else:
        n_pad, tm, tk = _tiled_shapes(n)

    # Padded bf16 Â built in one shot (no extra f32 NxN temp + padded recopy).
    adj_p = normalized_adjacency_padded(edge_index, n, n_pad)

    # Hoisted feature matmul: XW = X @ W1 once (f32), cast to bf16 for the Â matmul.
    xw = jnp.dot(x.astype(jnp.float32), w1.astype(jnp.float32))
    xw_p = jnp.pad(xw, ((0, n_pad - n), (0, 0))).astype(jnp.bfloat16)     # (n_pad, 16)

    w2_p = jnp.pad(w2.astype(jnp.bfloat16), ((0, 0), (0, cp - c)))        # (16, cp)
    b1_f = b1.astype(jnp.float32).reshape(1, HIDDEN)
    b2_p = jnp.pad(b2.astype(jnp.float32).reshape(1, c), ((0, 0), (0, cp - c)))

    if fused:
        vspec = pl.BlockSpec(memory_space=pltpu.MemorySpace.VMEM)
        out_p = pl.pallas_call(
            functools.partial(gcn_fused_kernel, out_size=c),
            out_shape=jax.ShapeDtypeStruct((n_pad, cp), jnp.float32),
            in_specs=[vspec, vspec, vspec, vspec, vspec],
            out_specs=vspec,
            compiler_params=pltpu.CompilerParams(vmem_limit_bytes=VMEM_LIMIT),
            cost_estimate=pl.CostEstimate(
                flops=2 * n_pad * n_pad * (HIDDEN + cp) + 2 * n_pad * HIDDEN * cp,
                transcendentals=n_pad * (cp + 1),
                bytes_accessed=2 * n_pad * n_pad + 2 * n_pad * HIDDEN
                + 2 * HIDDEN * cp + 4 * n_pad * cp,
            ),
        )(adj_p, xw_p, w2_p, b1_f, b2_p)
        return out_p[:n, :c]

    # ---- tiled two-call path (rows parallel across TCs, k = reduction) ----
    grid = (n_pad // tm, n_pad // tk)
    cparams = pltpu.CompilerParams(
        dimension_semantics=("parallel", "arbitrary"),
        vmem_limit_bytes=VMEM_LIMIT,
    )

    # layer 1: HW = relu(Â @ XW + b1) @ W2   (lane-dense bf16 intermediate)
    hw = pl.pallas_call(
        gcn_layer1_kernel,
        out_shape=jax.ShapeDtypeStruct((n_pad, cp), jnp.bfloat16),
        grid_spec=pltpu.PrefetchScalarGridSpec(
            num_scalar_prefetch=0,
            grid=grid,
            in_specs=[
                pl.BlockSpec((tm, tk), lambda i, k: (i, k)),         # Â tile
                pl.BlockSpec((tk, HIDDEN), lambda i, k: (k, 0)),     # XW rows for this k-tile
                pl.BlockSpec((HIDDEN, cp), lambda i, k: (0, 0)),     # W2 (whole, padded)
                pl.BlockSpec((1, HIDDEN), lambda i, k: (0, 0)),      # b1 (whole)
            ],
            out_specs=pl.BlockSpec((tm, cp), lambda i, k: (i, 0)),   # lane-dense HW slab
            scratch_shapes=[pltpu.VMEM((tm, HIDDEN), jnp.float32)],
        ),
        compiler_params=cparams,
        cost_estimate=pl.CostEstimate(
            flops=2 * n_pad * n_pad * HIDDEN + 2 * n_pad * HIDDEN * cp,
            transcendentals=0,
            bytes_accessed=2 * n_pad * n_pad
            + (n_pad // tm) * n_pad * HIDDEN * 2
            + 2 * n_pad * cp,
        ),
    )(adj_p, xw_p, w2_p, b1_f)

    # layer 2: out = log_softmax(Â @ HW + b2)
    out_p = pl.pallas_call(
        functools.partial(gcn_layer2_kernel, out_size=c),
        out_shape=jax.ShapeDtypeStruct((n_pad, cp), jnp.float32),
        grid_spec=pltpu.PrefetchScalarGridSpec(
            num_scalar_prefetch=0,
            grid=grid,
            in_specs=[
                pl.BlockSpec((tm, tk), lambda i, k: (i, k)),         # Â tile
                pl.BlockSpec((tk, cp), lambda i, k: (k, 0)),         # HW rows for this k-tile
                pl.BlockSpec((1, cp), lambda i, k: (0, 0)),          # b2 (whole, padded)
            ],
            out_specs=pl.BlockSpec((tm, cp), lambda i, k: (i, 0)),   # lane-dense output slab
            scratch_shapes=[pltpu.VMEM((tm, cp), jnp.float32)],
        ),
        compiler_params=cparams,
        cost_estimate=pl.CostEstimate(
            flops=2 * n_pad * n_pad * cp,
            transcendentals=n_pad * (cp + 1),
            bytes_accessed=2 * n_pad * n_pad
            + (n_pad // tm) * n_pad * cp * 2
            + 4 * n_pad * cp,
        ),
    )(adj_p, hw, b2_p)

    return out_p[:n, :c]


# --------------------------------------------------------------------------
# plain-JAX glue + reference (test only)
# --------------------------------------------------------------------------
def normalized_adjacency_f32(edge_index, num_nodes):
    """Unpadded f32 D^{-1/2}(A+I)D^{-1/2} for the reference check."""
    src, dst = edge_index[0], edge_index[1]
    loop = jnp.arange(num_nodes, dtype=edge_index.dtype)
    src = jnp.concatenate([src, loop])
    dst = jnp.concatenate([dst, loop])
    a = jnp.zeros((num_nodes, num_nodes), jnp.float32).at[dst, src].add(1.0)
    deg = jnp.sum(a, axis=1)
    dinv = jnp.where(deg > 0, 1.0 / jnp.sqrt(deg), 0.0)
    return dinv[:, None] * a * dinv[None, :]


def init_params(key, emb_size, out_size):
    """Deterministic glorot-uniform weights + zero biases (PyG GCNConv layout)."""
    k1, k2 = jax.random.split(key)

    def glorot(k, fan_in, fan_out):
        lim = jnp.sqrt(6.0 / (fan_in + fan_out))
        return jax.random.uniform(k, (fan_in, fan_out), jnp.float32, -lim, lim)

    w1 = glorot(k1, emb_size, HIDDEN)
    b1 = jnp.zeros((1, HIDDEN), jnp.float32)
    w2 = glorot(k2, HIDDEN, out_size)
    b2 = jnp.zeros((1, out_size), jnp.float32)
    return w1, b1, w2, b2


def gcn_reference(adj, x, w1, b1, w2, b2):
    h = jnp.maximum(adj @ (x @ w1) + b1, 0.0)
    o = adj @ (h @ w2) + b2
    return jax.nn.log_softmax(o, axis=1)


if __name__ == "__main__":
    emb_size = 32
    out_size = 8
    num_nodes = 16
    num_edges = 40

    key = jax.random.PRNGKey(0)
    kx, ke, kp = jax.random.split(key, 3)

    x = jax.random.normal(kx, (num_nodes, emb_size), jnp.float32)
    edge_index = jax.random.randint(ke, (2, num_edges), 0, num_nodes, jnp.int32)

    w1, b1, w2, b2 = init_params(kp, emb_size, out_size)

    out = gcn_forward(edge_index, x, w1, b1, w2, b2)
    jax.block_until_ready(out)

    assert out.shape == (num_nodes, out_size)
    # rows of log_softmax should exp-sum to ~1
    assert bool(jnp.allclose(jnp.sum(jnp.exp(out), axis=1), 1.0, atol=1e-4))
    # match the f32 reference (bf16 matmul inputs -> loose tolerance)
    adj_ref = normalized_adjacency_f32(edge_index, num_nodes)
    ref = gcn_reference(adj_ref, x, w1, b1, w2, b2)
    assert bool(jnp.allclose(out, ref, atol=1e-1, rtol=1e-1))
    print("KERNEL_OK")
</pallas_src>

<mosaic_0001>
module attributes {stable_mosaic.version = 11 : i64} {
  func.func @gcn_fused_kernel(%arg0: memref<128x128xbf16, #tpu.memory_space<vmem>>, %arg1: memref<128x16xbf16, #tpu.memory_space<vmem>>, %arg2: memref<16x128xbf16, #tpu.memory_space<vmem>>, %arg3: memref<1x16xf32, #tpu.memory_space<vmem>>, %arg4: memref<1x128xf32, #tpu.memory_space<vmem>>, %arg5: memref<128x128xf32, #tpu.memory_space<vmem>>) attributes {dimension_semantics = [], scalar_prefetch = 0 : i64, scratch_operands = 0 : i64, tpu.core_type = #tpu.core_type<tc>} {
    %c0 = arith.constant 0 : index
    %c0_0 = arith.constant 0 : index
    %0 = vector.load %arg0[%c0, %c0_0] : memref<128x128xbf16, #tpu.memory_space<vmem>>, vector<128x128xbf16>
    %c0_1 = arith.constant 0 : index
    %c0_2 = arith.constant 0 : index
    %1 = vector.load %arg1[%c0_1, %c0_2] : memref<128x16xbf16, #tpu.memory_space<vmem>>, vector<128x16xbf16>
    %cst = arith.constant dense<0.000000e+00> : vector<128x16xf32>
    %2 = tpu.matmul %0, %1, %cst {dimension_numbers = #tpu.dot_dimension_numbers<[1], [0], [0], [1], [0, 0, 1, 1], [], []>} : vector<128x128xbf16>, vector<128x16xbf16>, vector<128x16xf32> -> vector<128x16xf32>
    %c0_3 = arith.constant 0 : index
    %c0_4 = arith.constant 0 : index
    %3 = vector.load %arg3[%c0_3, %c0_4] : memref<1x16xf32, #tpu.memory_space<vmem>>, vector<1x16xf32>
    %4 = vector.broadcast %3 : vector<1x16xf32> to vector<128x16xf32>
    %5 = arith.addf %2, %4 : vector<128x16xf32>
    %cst_5 = arith.constant 0.000000e+00 : f32
    %6 = vector.broadcast %cst_5 : f32 to vector<128x16xf32>
    %7 = arith.maximumf %5, %6 : vector<128x16xf32>
    %8 = arith.truncf %7 : vector<128x16xf32> to vector<128x16xbf16>
    %c0_6 = arith.constant 0 : index
    %c0_7 = arith.constant 0 : index
    %9 = vector.load %arg2[%c0_6, %c0_7] : memref<16x128xbf16, #tpu.memory_space<vmem>>, vector<16x128xbf16>
    %cst_8 = arith.constant dense<0.000000e+00> : vector<128x128xf32>
    %10 = tpu.matmul %8, %9, %cst_8 {dimension_numbers = #tpu.dot_dimension_numbers<[1], [0], [0], [1], [0, 0, 1, 1], [], []>} : vector<128x16xbf16>, vector<16x128xbf16>, vector<128x128xf32> -> vector<128x128xf32>
    %11 = arith.truncf %10 : vector<128x128xf32> to vector<128x128xbf16>
    %cst_9 = arith.constant dense<0.000000e+00> : vector<128x128xf32>
    %12 = tpu.matmul %0, %11, %cst_9 {dimension_numbers = #tpu.dot_dimension_numbers<[1], [0], [0], [1], [0, 0, 1, 1], [], []>} : vector<128x128xbf16>, vector<128x128xbf16>, vector<128x128xf32> -> vector<128x128xf32>
    %c0_10 = arith.constant 0 : index
    %c0_11 = arith.constant 0 : index
    %13 = vector.load %arg4[%c0_10, %c0_11] : memref<1x128xf32, #tpu.memory_space<vmem>>, vector<1x128xf32>
    %14 = vector.broadcast %13 : vector<1x128xf32> to vector<128x128xf32>
    %15 = arith.addf %12, %14 : vector<128x128xf32>
    %16 = tpu.iota {dimensions = array<i32: 1>} : vector<128x128xi32>
    %c8_i32 = arith.constant 8 : i32
    %17 = vector.broadcast %c8_i32 : i32 to vector<128x128xi32>
    %18 = arith.cmpi slt, %16, %17 : vector<128x128xi32>
    %cst_12 = arith.constant -1.000000e+30 : f32
    %19 = vector.broadcast %cst_12 : f32 to vector<128x128xf32>
    %20 = arith.select %18, %15, %19 : vector<128x128xi1>, vector<128x128xf32>
    %cst_13 = arith.constant dense<0xFF800000> : vector<128xf32>
    %21 = vector.multi_reduction <maximumf>, %20, %cst_13 [1] : vector<128x128xf32> to vector<128xf32>
    %22 = vector.shape_cast %21 : vector<128xf32> to vector<128x1xf32>
    %23 = vector.broadcast %22 : vector<128x1xf32> to vector<128x128xf32>
    %24 = arith.subf %20, %23 : vector<128x128xf32>
    %25 = math.exp %24 : vector<128x128xf32>
    %cst_14 = arith.constant dense<0.000000e+00> : vector<128xf32>
    %26 = vector.multi_reduction <add>, %25, %cst_14 [1] : vector<128x128xf32> to vector<128xf32>
    %27 = vector.shape_cast %26 : vector<128xf32> to vector<128x1xf32>
    %28 = math.log %27 : vector<128x1xf32>
    %29 = vector.broadcast %28 : vector<128x1xf32> to vector<128x128xf32>
    %30 = arith.subf %24, %29 : vector<128x128xf32>
    %c0_15 = arith.constant 0 : index
    %c0_16 = arith.constant 0 : index
    %31 = vector.load %arg5[%c0_15, %c0_16] : memref<128x128xf32, #tpu.memory_space<vmem>>, vector<128x128xf32>
    tpu.vector_store %arg5[%c0_15, %c0_16], %30 {strides = array<i32>} : memref<128x128xf32, #tpu.memory_space<vmem>>, vector<128x128xf32>,
    return
  }
}

</mosaic_0001>

<llo_original>
// kernel: gcn_forward.1
$region0: #{gcn_forward.1}
  #allocation0 [shape = 'u32[]', space=smem, size = 0x4, offset = 0x4, fixed_abs, tag = 'smem constant byte address 0x4 - core index']
  #allocation1 [shape = 'u32[144,128]{1,0:T(1,128)}', space=vmem, size = 0x12000, scoped, tag = 'internal scratch']
  %s0 = inlined_call_operand.vmem [shape: bf16[128,128], index: 0, kind: input, shape index: {}]
  %s1 = inlined_call_operand.vmem [shape: bf16[128,16], index: 1, kind: input, shape index: {}]
  %s2 = inlined_call_operand.vmem [shape: bf16[16,128], index: 2, kind: input, shape index: {}]
  %s3 = inlined_call_operand.vmem [shape: f32[1,16], index: 3, kind: input, shape index: {}]
  %s4 = inlined_call_operand.vmem [shape: f32[1,128], index: 4, kind: input, shape index: {}]
  %s5 = inlined_call_operand.vmem [shape: f32[128,128], index: 5, kind: output, shape index: {}]
  %s6 = sld [smem:[#allocation0]]
  $region30: #{gcn_forward.1} parent=0
    _
  %s8 = ssub.s32 1, %s6
  %s9 = scalar_select 0, %s8, %s6
  // Predicated region
  $region2: #{gcn_forward.1} parent=0 // pred_check
    _
  $region3: #{gcn_forward.1} parent=0 // pred_check_branch
    %11 = sbr.rel (0) target = $region5
  $region4: #{gcn_forward.1} parent=0 // pred_region
    _
  $region5: #{gcn_forward.1} parent=0 // pred_fallthru
    _
  // Predicated region
  $region6: #{gcn_forward.1} parent=0 // pred_check
    _
  $region7: #{gcn_forward.1} parent=0 // pred_check_branch
    %13 = sbr.rel (0) target = $region9
  $region8: #{gcn_forward.1} parent=0 // pred_region
    _
  $region9: #{gcn_forward.1} parent=0 // pred_fallthru
    _
  // Predicated region
  $region10: #{gcn_forward.1} parent=0 // pred_check
    _
  $region11: #{gcn_forward.1} parent=0 // pred_check_branch
    %15 = sbr.rel (0) target = $region13
  $region12: #{gcn_forward.1} parent=0 // pred_region
    _
  $region13: #{gcn_forward.1} parent=0 // pred_fallthru
    _
  // Predicated region
  $region14: #{gcn_forward.1} parent=0 // pred_check
    _
  $region15: #{gcn_forward.1} parent=0 // pred_check_branch
    %17 = sbr.rel (0) target = $region17
  $region16: #{gcn_forward.1} parent=0 // pred_region
    _
  $region17: #{gcn_forward.1} parent=0 // pred_fallthru
    _
  // Predicated region
  $region18: #{gcn_forward.1} parent=0 // pred_check
    _
  $region19: #{gcn_forward.1} parent=0 // pred_check_branch
    %19 = sbr.rel (0) target = $region21
  $region20: #{gcn_forward.1} parent=0 // pred_region
    _
  $region21: #{gcn_forward.1} parent=0 // pred_fallthru
    _
  %v21 = vld [vmem:[%s0] sm:$0xf]
  %v22 = vld [vmem:[%s0 + $0x4] sm:$0xf]
  %v23 = vld [vmem:[%s0 + $0x8] sm:$0xf]
  %v24 = vld [vmem:[%s0 + $0xc] sm:$0xf]
  %v25 = vld [vmem:[%s0 + $0x10] sm:$0xf]
  %v26 = vld [vmem:[%s0 + $0x14] sm:$0xf]
  %v27 = vld [vmem:[%s0 + $0x18] sm:$0xf]
  %v28 = vld [vmem:[%s0 + $0x1c] sm:$0xf]
  %v29 = vld [vmem:[%s0 + $0x20] sm:$0xf]
  %v30 = vld [vmem:[%s0 + $0x24] sm:$0xf]
  %v31 = vld [vmem:[%s0 + $0x28] sm:$0xf]
  %v32 = vld [vmem:[%s0 + $0x2c] sm:$0xf]
  %v33 = vld [vmem:[%s0 + $0x30] sm:$0xf]
  %v34 = vld [vmem:[%s0 + $0x34] sm:$0xf]
  %v35 = vld [vmem:[%s0 + $0x38] sm:$0xf]
  %v36 = vld [vmem:[%s0 + $0x3c] sm:$0xf]
  %v37 = vld [vmem:[%s1] sm:$0xf]
  %v38 = vld [vmem:[%s1 + $0x4] sm:$0xf]
  %v39 = vld [vmem:[%s1 + $0x8] sm:$0xf]
  %v40 = vld [vmem:[%s1 + $0xc] sm:$0xf]
  %v41 = vld [vmem:[%s1 + $0x10] sm:$0xf]
  %v42 = vld [vmem:[%s1 + $0x14] sm:$0xf]
  %v43 = vld [vmem:[%s1 + $0x18] sm:$0xf]
  %v44 = vld [vmem:[%s1 + $0x1c] sm:$0xf]
  %v45 = vld [vmem:[%s1 + $0x20] sm:$0xf]
  %v46 = vld [vmem:[%s1 + $0x24] sm:$0xf]
  %v47 = vld [vmem:[%s1 + $0x28] sm:$0xf]
  %v48 = vld [vmem:[%s1 + $0x2c] sm:$0xf]
  %v49 = vld [vmem:[%s1 + $0x30] sm:$0xf]
  %v50 = vld [vmem:[%s1 + $0x34] sm:$0xf]
  %v51 = vld [vmem:[%s1 + $0x38] sm:$0xf]
  %v52 = vld [vmem:[%s1 + $0x3c] sm:$0xf]
  %v53 = vld [vmem:[%s3] sm:$0x1]
  %v55 = vlaneseq
  %v56 = vshrl.u32 %v55, 7
  %v57 = vsub.s32 0, %v56
  %v58 = vrot.slane %v53, %v57
  %v76 = vunpack.c.l.b16 %v21
  %v77 = vunpack.c.l.b16 %v22
  %v78 = vunpack.c.l.b16 %v23
  %v79 = vunpack.c.l.b16 %v24
  %v80 = vunpack.c.l.b16 %v25
  %v81 = vunpack.c.l.b16 %v26
  %v82 = vunpack.c.l.b16 %v27
  %v83 = vunpack.c.l.b16 %v28
  %v84 = vunpack.c.l.b16 %v29
  %v85 = vunpack.c.l.b16 %v30
  %v86 = vunpack.c.l.b16 %v31
  %v87 = vunpack.c.l.b16 %v32
  %v88 = vunpack.c.l.b16 %v33
  %v89 = vunpack.c.l.b16 %v34
  %v90 = vunpack.c.l.b16 %v35
  %v91 = vunpack.c.l.b16 %v36
  %v92 = vpack.c.b16 %v77, %v76
  %v93 = vpack.c.b16 %v79, %v78
  %v94 = vpack.c.b16 %v81, %v80
  %v95 = vpack.c.b16 %v83, %v82
  %v96 = vpack.c.b16 %v85, %v84
  %v97 = vpack.c.b16 %v87, %v86
  %v98 = vpack.c.b16 %v89, %v88
  %v99 = vpack.c.b16 %v91, %v90
  %v124 = vunpack.c.l.b16 %v37
  %v125 = vunpack.c.l.b16 %v38
  %v126 = vunpack.c.l.b16 %v39
  %v127 = vunpack.c.l.b16 %v40
  %v128 = vunpack.c.l.b16 %v41
  %v129 = vunpack.c.l.b16 %v42
  %v130 = vunpack.c.l.b16 %v43
  %v131 = vunpack.c.l.b16 %v44
  %v132 = vunpack.c.l.b16 %v45
  %v133 = vunpack.c.l.b16 %v46
  %v134 = vunpack.c.l.b16 %v47
  %v135 = vunpack.c.l.b16 %v48
  %v136 = vunpack.c.l.b16 %v49
  %v137 = vunpack.c.l.b16 %v50
  %v138 = vunpack.c.l.b16 %v51
  %v139 = vunpack.c.l.b16 %v52
  %v140 = vpack.c.b16 %v125, %v124
  %v141 = vpack.c.b16 %v127, %v126
  %v142 = vpack.c.b16 %v129, %v128
  %v143 = vpack.c.b16 %v131, %v130
  %v144 = vpack.c.b16 %v133, %v132
  %v145 = vpack.c.b16 %v135, %v134
  %v146 = vpack.c.b16 %v137, %v136
  %v147 = vpack.c.b16 %v139, %v138
  %156 = vmatprep.subr.bf16.mxu0 0
  %157 = vmatpush1.bf16.msra.mxu0 %v140
  %158 = vmatprep.subr.bf16.mxu0 0
  %159 = vmatpush1.bf16.msra.mxu0 %v141
  %160 = vmatprep.subr.bf16.mxu0 0
  %161 = vmatpush1.bf16.msra.mxu0 %v142
  %162 = vmatprep.subr.bf16.mxu0 0
  %163 = vmatpush1.bf16.msra.mxu0 %v143
  %164 = vmatprep.subr.bf16.mxu0 0
  %165 = vmatpush1.bf16.msra.mxu0 %v144
  %166 = vmatprep.subr.bf16.mxu0 0
  %167 = vmatpush1.bf16.msra.mxu0 %v145
  %168 = vmatprep.subr.bf16.mxu0 0
  %169 = vmatpush1.bf16.msra.mxu0 %v146
  %170 = vmatprep.subr.bf16.mxu0 0
  %171 = vmatpush1.bf16.msra.mxu0 %v147
  %172 = vmatprep.subr.bf16.mxu0 0
  %173 = vmatpush1.bf16.msra.mxu0 0
  %174 = vmatprep.subr.bf16.mxu0 0
  %175 = vmatpush1.bf16.msra.mxu0 0
  %176 = vmatprep.subr.bf16.mxu0 0
  %177 = vmatpush1.bf16.msra.mxu0 0
  %178 = vmatprep.subr.bf16.mxu0 0
  %179 = vmatpush1.bf16.msra.mxu0 0
  %180 = vmatprep.subr.bf16.mxu0 0
  %181 = vmatpush1.bf16.msra.mxu0 0
  %182 = vmatprep.subr.bf16.mxu0 0
  %183 = vmatpush1.bf16.msra.mxu0 0
  %184 = vmatprep.subr.bf16.mxu0 0
  %185 = vmatpush1.bf16.msra.mxu0 0
  %186 = vmatprep.subr.bf16.mxu0 0
  %187 = vmatpush1.bf16.msra.mxu0 0
  %188 = vmatprep.mubr.bf16.mxu0 0
  %189 = vmatmul.mubr.bf16.gmra.mrb[0].mxu0 %v92
  %v190 = vpop.f32.mrb[0].mxu0
  %v191 = vadd.f32 %v58, %v190
  %v192 = vpop.f32.mrb[0].mxu0
  %v193 = vpop.f32.mrb[0].mxu0
  %v194 = vadd.f32 %v58, %v193
  %v195 = vpop.f32.mrb[0].mxu0
  %196 = vmatprep.mubr.bf16.mxu0 0
  %197 = vmatmul.mubr.bf16.gmra.mrb[0].mxu0 %v93
  %v198 = vpop.f32.mrb[0].mxu0
  %v199 = vadd.f32 %v58, %v198
  %v200 = vpop.f32.mrb[0].mxu0
  %v201 = vpop.f32.mrb[0].mxu0
  %v202 = vadd.f32 %v58, %v201
  %v203 = vpop.f32.mrb[0].mxu0
  %204 = vmatprep.mubr.bf16.mxu0 0
  %205 = vmatmul.mubr.bf16.gmra.mrb[0].mxu0 %v94
  %v206 = vpop.f32.mrb[0].mxu0
  %v207 = vadd.f32 %v58, %v206
  %v208 = vpop.f32.mrb[0].mxu0
  %v209 = vpop.f32.mrb[0].mxu0
  %v210 = vadd.f32 %v58, %v209
  %v211 = vpop.f32.mrb[0].mxu0
  %212 = vmatprep.mubr.bf16.mxu0 0
  %213 = vmatmul.mubr.bf16.gmra.mrb[0].mxu0 %v95
  %v214 = vpop.f32.mrb[0].mxu0
  %v215 = vadd.f32 %v58, %v214
  %v216 = vpop.f32.mrb[0].mxu0
  %v217 = vpop.f32.mrb[0].mxu0
  %v218 = vadd.f32 %v58, %v217
  %v219 = vpop.f32.mrb[0].mxu0
  %220 = vmatprep.mubr.bf16.mxu0 0
  %221 = vmatmul.mubr.bf16.gmra.mrb[0].mxu0 %v96
  %v222 = vpop.f32.mrb[0].mxu0
  %v223 = vadd.f32 %v58, %v222
  %v224 = vpop.f32.mrb[0].mxu0
  %v225 = vpop.f32.mrb[0].mxu0
  %v226 = vadd.f32 %v58, %v225
  %v227 = vpop.f32.mrb[0].mxu0
  %228 = vmatprep.mubr.bf16.mxu0 0
  %229 = vmatmul.mubr.bf16.gmra.mrb[0].mxu0 %v97
  %v230 = vpop.f32.mrb[0].mxu0
  %v231 = vadd.f32 %v58, %v230
  %v232 = vpop.f32.mrb[0].mxu0
  %v233 = vpop.f32.mrb[0].mxu0
  %v234 = vadd.f32 %v58, %v233
  %v235 = vpop.f32.mrb[0].mxu0
  %236 = vmatprep.mubr.bf16.mxu0 0
  %237 = vmatmul.mubr.bf16.gmra.mrb[0].mxu0 %v98
  %v238 = vpop.f32.mrb[0].mxu0
  %v239 = vadd.f32 %v58, %v238
  %v240 = vpop.f32.mrb[0].mxu0
  %v241 = vpop.f32.mrb[0].mxu0
  %v242 = vadd.f32 %v58, %v241
  %v243 = vpop.f32.mrb[0].mxu0
  %244 = vmatprep.mubr.bf16.mxu0 0
  %245 = vmatmul.mubr.bf16.gmra.mrb[0].mxu0 %v99
  %v246 = vpop.f32.mrb[0].mxu0
  %v247 = vadd.f32 %v58, %v246
  %v248 = vpop.f32.mrb[0].mxu0
  %v249 = vpop.f32.mrb[0].mxu0
  %v250 = vadd.f32 %v58, %v249
  %v251 = vpop.f32.mrb[0].mxu0
  %252 = vdwg.mxu0
  %v253 = vmax.f32 %v191, 0.0
  %v254 = vmax.f32 %v194, 0.0
  %v255 = vmax.f32 %v199, 0.0
  %v256 = vmax.f32 %v202, 0.0
  %v257 = vmax.f32 %v207, 0.0
  %v258 = vmax.f32 %v210, 0.0
  %v259 = vmax.f32 %v215, 0.0
  %v260 = vmax.f32 %v218, 0.0
  %v261 = vmax.f32 %v223, 0.0
  %v262 = vmax.f32 %v226, 0.0
  %v263 = vmax.f32 %v231, 0.0
  %v264 = vmax.f32 %v234, 0.0
  %v265 = vmax.f32 %v239, 0.0
  %v266 = vmax.f32 %v242, 0.0
  %v267 = vmax.f32 %v247, 0.0
  %v268 = vmax.f32 %v250, 0.0
  %v269 = vpack.c.bf16 %v254, %v253
  %v270 = vpack.c.bf16 %v256, %v255
  %v271 = vpack.c.bf16 %v258, %v257
  %v272 = vpack.c.bf16 %v260, %v259
  %v273 = vpack.c.bf16 %v262, %v261
  %v274 = vpack.c.bf16 %v264, %v263
  %v275 = vpack.c.bf16 %v266, %v265
  %v276 = vpack.c.bf16 %v268, %v267
  %v277 = vld [vmem:[%s2] sm:$0xf]
  %v278 = vld [vmem:[%s2 + $0x4] sm:$0xf]
  %v281 = vunpack.c.l.b16 %v277
  %v282 = vunpack.c.l.b16 %v278
  %v283 = vpack.c.b16 %v282, %v281
  %vm285 = vcmask 130048
  %v287 = vsel %vm285, %v269, 0
  %v290 = vsel %vm285, %v270, 0
  %v293 = vsel %vm285, %v271, 0
  %v296 = vsel %vm285, %v272, 0
  %v299 = vsel %vm285, %v273, 0
  %v302 = vsel %vm285, %v274, 0
  %v305 = vsel %vm285, %v275, 0
  %v308 = vsel %vm285, %v276, 0
  %310 = vmatprep.subr.bf16.mxu0 0
  %311 = vmatpush1.bf16.msra.mxu0 %v283
  %312 = vmatprep.subr.bf16.mxu0 0
  %313 = vmatpush1.bf16.msra.mxu0 0
  %314 = vmatprep.subr.bf16.mxu0 0
  %315 = vmatpush1.bf16.msra.mxu0 0
  %316 = vmatprep.subr.bf16.mxu0 0
  %317 = vmatpush1.bf16.msra.mxu0 0
  %318 = vmatprep.subr.bf16.mxu0 0
  %319 = vmatpush1.bf16.msra.mxu0 0
  %320 = vmatprep.subr.bf16.mxu0 0
  %321 = vmatpush1.bf16.msra.mxu0 0
  %322 = vmatprep.subr.bf16.mxu0 0
  %323 = vmatpush1.bf16.msra.mxu0 0
  %324 = vmatprep.subr.bf16.mxu0 0
  %325 = vmatpush1.bf16.msra.mxu0 0
  %326 = vmatprep.subr.bf16.mxu0 0
  %327 = vmatpush1.bf16.msra.mxu0 0
  %328 = vmatprep.subr.bf16.mxu0 0
  %329 = vmatpush1.bf16.msra.mxu0 0
  %330 = vmatprep.subr.bf16.mxu0 0
  %331 = vmatpush1.bf16.msra.mxu0 0
  %332 = vmatprep.subr.bf16.mxu0 0
  %333 = vmatpush1.bf16.msra.mxu0 0
  %334 = vmatprep.subr.bf16.mxu0 0
  %335 = vmatpush1.bf16.msra.mxu0 0
  %336 = vmatprep.subr.bf16.mxu0 0
  %337 = vmatpush1.bf16.msra.mxu0 0
  %338 = vmatprep.subr.bf16.mxu0 0
  %339 = vmatpush1.bf16.msra.mxu0 0
  %340 = vmatprep.subr.bf16.mxu0 0
  %341 = vmatpush1.bf16.msra.mxu0 0
  %342 = vmatprep.mubr.bf16.mxu0 0
  %343 = vmatmul.mubr.bf16.gmra.mrb[0].mxu0 %v287
  %v344 = vpop.f32.mrb[0].mxu0
  %v345 = vadd.f32 0.0, %v344
  %v346 = vpop.f32.mrb[0].mxu0
  %v347 = vpop.f32.mrb[0].mxu0
  %v348 = vadd.f32 0.0, %v347
  %v349 = vpop.f32.mrb[0].mxu0
  %350 = vmatprep.mubr.bf16.mxu0 0
  %351 = vmatmul.mubr.bf16.gmra.mrb[0].mxu0 %v290
  %v352 = vpop.f32.mrb[0].mxu0
  %v353 = vadd.f32 0.0, %v352
  %v354 = vpop.f32.mrb[0].mxu0
  %v355 = vpop.f32.mrb[0].mxu0
  %v356 = vadd.f32 0.0, %v355
  %v357 = vpop.f32.mrb[0].mxu0
  %358 = vmatprep.mubr.bf16.mxu0 0
  %359 = vmatmul.mubr.bf16.gmra.mrb[0].mxu0 %v293
  %v360 = vpop.f32.mrb[0].mxu0
  %v361 = vadd.f32 0.0, %v360
  %v362 = vpop.f32.mrb[0].mxu0
  %v363 = vpop.f32.mrb[0].mxu0
  %v364 = vadd.f32 0.0, %v363
  %v365 = vpop.f32.mrb[0].mxu0
  %366 = vmatprep.mubr.bf16.mxu0 0
  %367 = vmatmul.mubr.bf16.gmra.mrb[0].mxu0 %v296
  %v368 = vpop.f32.mrb[0].mxu0
  %v369 = vadd.f32 0.0, %v368
  %v370 = vpop.f32.mrb[0].mxu0
  %v371 = vpop.f32.mrb[0].mxu0
  %v372 = vadd.f32 0.0, %v371
  %v373 = vpop.f32.mrb[0].mxu0
  %374 = vmatprep.mubr.bf16.mxu0 0
  %375 = vmatmul.mubr.bf16.gmra.mrb[0].mxu0 %v299
  %v376 = vpop.f32.mrb[0].mxu0
  %v377 = vadd.f32 0.0, %v376
  %v378 = vpop.f32.mrb[0].mxu0
  %v379 = vpop.f32.mrb[0].mxu0
  %v380 = vadd.f32 0.0, %v379
  %v381 = vpop.f32.mrb[0].mxu0
  %382 = vmatprep.mubr.bf16.mxu0 0
  %383 = vmatmul.mubr.bf16.gmra.mrb[0].mxu0 %v302
  %v384 = vpop.f32.mrb[0].mxu0
  %v385 = vadd.f32 0.0, %v384
  %v386 = vpop.f32.mrb[0].mxu0
  %v387 = vpop.f32.mrb[0].mxu0
  %v388 = vadd.f32 0.0, %v387
  %v389 = vpop.f32.mrb[0].mxu0
  %390 = vmatprep.mubr.bf16.mxu0 0
  %391 = vmatmul.mubr.bf16.gmra.mrb[0].mxu0 %v305
  %v392 = vpop.f32.mrb[0].mxu0
  %v393 = vadd.f32 0.0, %v392
  %v394 = vpop.f32.mrb[0].mxu0
  %v395 = vpop.f32.mrb[0].mxu0
  %v396 = vadd.f32 0.0, %v395
  %v397 = vpop.f32.mrb[0].mxu0
  %398 = vmatprep.mubr.bf16.mxu0 0
  %399 = vmatmul.mubr.bf16.gmra.mrb[0].mxu0 %v308
  %v400 = vpop.f32.mrb[0].mxu0
  %v401 = vadd.f32 0.0, %v400
  %v402 = vpop.f32.mrb[0].mxu0
  %v403 = vpop.f32.mrb[0].mxu0
  %v404 = vadd.f32 0.0, %v403
  %v405 = vpop.f32.mrb[0].mxu0
  %406 = vdwg.mxu0
  %v407 = vpack.c.bf16 %v348, %v345
  %v408 = vpack.c.bf16 %v356, %v353
  %v409 = vpack.c.bf16 %v364, %v361
  %v410 = vpack.c.bf16 %v372, %v369
  %v411 = vpack.c.bf16 %v380, %v377
  %v412 = vpack.c.bf16 %v388, %v385
  %v413 = vpack.c.bf16 %v396, %v393
  %v414 = vpack.c.bf16 %v404, %v401
  %v415 = vld [vmem:[%s4] sm:$0x1]
  %v417 = vlaneseq
  %v418 = vshrl.u32 %v417, 7
  %v419 = vsub.s32 0, %v418
  %v420 = vrot.slane %v415, %v419
  %422 = vmatprep.subr.bf16.mxu0 0
  %423 = vmatpush1.bf16.msra.mxu0 %v407
  %424 = vmatprep.subr.bf16.mxu0 0
  %425 = vmatpush1.bf16.msra.mxu0 %v408
  %426 = vmatprep.subr.bf16.mxu0 0
  %427 = vmatpush1.bf16.msra.mxu0 %v409
  %428 = vmatprep.subr.bf16.mxu0 0
  %429 = vmatpush1.bf16.msra.mxu0 %v410
  %430 = vmatprep.subr.bf16.mxu0 0
  %431 = vmatpush1.bf16.msra.mxu0 %v411
  %432 = vmatprep.subr.bf16.mxu0 0
  %433 = vmatpush1.bf16.msra.mxu0 %v412
  %434 = vmatprep.subr.bf16.mxu0 0
  %435 = vmatpush1.bf16.msra.mxu0 %v413
  %436 = vmatprep.subr.bf16.mxu0 0
  %437 = vmatpush1.bf16.msra.mxu0 %v414
  %438 = vmatprep.subr.bf16.mxu0 0
  %439 = vmatpush1.bf16.msra.mxu0 0
  %440 = vmatprep.subr.bf16.mxu0 0
  %441 = vmatpush1.bf16.msra.mxu0 0
  %442 = vmatprep.subr.bf16.mxu0 0
  %443 = vmatpush1.bf16.msra.mxu0 0
  %444 = vmatprep.subr.bf16.mxu0 0
  %445 = vmatpush1.bf16.msra.mxu0 0
  %446 = vmatprep.subr.bf16.mxu0 0
  %447 = vmatpush1.bf16.msra.mxu0 0
  %448 = vmatprep.subr.bf16.mxu0 0
  %449 = vmatpush1.bf16.msra.mxu0 0
  %450 = vmatprep.subr.bf16.mxu0 0
  %451 = vmatpush1.bf16.msra.mxu0 0
  %452 = vmatprep.subr.bf16.mxu0 0
  %453 = vmatpush1.bf16.msra.mxu0 0
  %454 = vmatprep.mubr.bf16.mxu0 0
  %455 = vmatmul.mubr.bf16.gmra.mrb[0].mxu0 %v92
  %v456 = vpop.f32.mrb[0].mxu0
  %v457 = vadd.f32 %v420, %v456
  %v458 = vpop.f32.mrb[0].mxu0
  %v459 = vpop.f32.mrb[0].mxu0
  %v460 = vadd.f32 %v420, %v459
  %v461 = vpop.f32.mrb[0].mxu0
  %462 = vmatprep.mubr.bf16.mxu0 0
  %463 = vmatmul.mubr.bf16.gmra.mrb[0].mxu0 %v93
  %v464 = vpop.f32.mrb[0].mxu0
  %v465 = vadd.f32 %v420, %v464
  %v466 = vpop.f32.mrb[0].mxu0
  %v467 = vpop.f32.mrb[0].mxu0
  %v468 = vadd.f32 %v420, %v467
  %v469 = vpop.f32.mrb[0].mxu0
  %470 = vmatprep.mubr.bf16.mxu0 0
  %471 = vmatmul.mubr.bf16.gmra.mrb[0].mxu0 %v94
  %v472 = vpop.f32.mrb[0].mxu0
  %v473 = vadd.f32 %v420, %v472
  %v474 = vpop.f32.mrb[0].mxu0
  %v475 = vpop.f32.mrb[0].mxu0
  %v476 = vadd.f32 %v420, %v475
  %v477 = vpop.f32.mrb[0].mxu0
  %478 = vmatprep.mubr.bf16.mxu0 0
  %479 = vmatmul.mubr.bf16.gmra.mrb[0].mxu0 %v95
  %v480 = vpop.f32.mrb[0].mxu0
  %v481 = vadd.f32 %v420, %v480
  %v482 = vpop.f32.mrb[0].mxu0
  %v483 = vpop.f32.mrb[0].mxu0
  %v484 = vadd.f32 %v420, %v483
  %v485 = vpop.f32.mrb[0].mxu0
  %486 = vmatprep.mubr.bf16.mxu0 0
  %487 = vmatmul.mubr.bf16.gmra.mrb[0].mxu0 %v96
  %v488 = vpop.f32.mrb[0].mxu0
  %v489 = vadd.f32 %v420, %v488
  %v490 = vpop.f32.mrb[0].mxu0
  %v491 = vpop.f32.mrb[0].mxu0
  %v492 = vadd.f32 %v420, %v491
  %v493 = vpop.f32.mrb[0].mxu0
  %494 = vmatprep.mubr.bf16.mxu0 0
  %495 = vmatmul.mubr.bf16.gmra.mrb[0].mxu0 %v97
  %v496 = vpop.f32.mrb[0].mxu0
  %v497 = vadd.f32 %v420, %v496
  %v498 = vpop.f32.mrb[0].mxu0
  %v499 = vpop.f32.mrb[0].mxu0
  %v500 = vadd.f32 %v420, %v499
  %v501 = vpop.f32.mrb[0].mxu0
  %502 = vmatprep.mubr.bf16.mxu0 0
  %503 = vmatmul.mubr.bf16.gmra.mrb[0].mxu0 %v98
  %v504 = vpop.f32.mrb[0].mxu0
  %v505 = vadd.f32 %v420, %v504
  %v506 = vpop.f32.mrb[0].mxu0
  %v507 = vpop.f32.mrb[0].mxu0
  %v508 = vadd.f32 %v420, %v507
  %v509 = vpop.f32.mrb[0].mxu0
  %510 = vmatprep.mubr.bf16.mxu0 0
  %511 = vmatmul.mubr.bf16.gmra.mrb[0].mxu0 %v99
  %v512 = vpop.f32.mrb[0].mxu0
  %v513 = vadd.f32 %v420, %v512
  %v514 = vpop.f32.mrb[0].mxu0
  %v515 = vpop.f32.mrb[0].mxu0
  %v516 = vadd.f32 %v420, %v515
  %v517 = vpop.f32.mrb[0].mxu0
  %518 = vdwg.mxu0
  %v519 = vlaneseq
  %v520 = vand.u32 %v519, 127
  %vm521 = vcmp.lt.s32.totalorder %v520, 8
  %v522 = vsel %vm521, %v457, -1e+30
  %v523 = vsel %vm521, %v460, -1e+30
  %v524 = vsel %vm521, %v465, -1e+30
  %v525 = vsel %vm521, %v468, -1e+30
  %v526 = vsel %vm521, %v473, -1e+30
  %v527 = vsel %vm521, %v476, -1e+30
  %v528 = vsel %vm521, %v481, -1e+30
  %v529 = vsel %vm521, %v484, -1e+30
  %v530 = vsel %vm521, %v489, -1e+30
  %v531 = vsel %vm521, %v492, -1e+30
  %v532 = vsel %vm521, %v497, -1e+30
  %v533 = vsel %vm521, %v500, -1e+30
  %v534 = vsel %vm521, %v505, -1e+30
  %v535 = vsel %vm521, %v508, -1e+30
  %v536 = vsel %vm521, %v513, -1e+30
  %v537 = vsel %vm521, %v516, -1e+30
  %538 = vmax.xlane.f32.xlu0 %v522
  %v539 = vpop.xlane.xlu0 %538
  %540 = vmax.xlane.f32.xlu0 %v523
  %v541 = vpop.xlane.xlu0 %540
  %542 = vmax.xlane.f32.xlu0 %v524
  %v543 = vpop.xlane.xlu0 %542
  %544 = vmax.xlane.f32.xlu0 %v525
  %v545 = vpop.xlane.xlu0 %544
  %546 = vmax.xlane.f32.xlu0 %v526
  %v547 = vpop.xlane.xlu0 %546
  %548 = vmax.xlane.f32.xlu0 %v527
  %v549 = vpop.xlane.xlu0 %548
  %550 = vmax.xlane.f32.xlu0 %v528
  %v551 = vpop.xlane.xlu0 %550
  %552 = vmax.xlane.f32.xlu0 %v529
  %v553 = vpop.xlane.xlu0 %552
  %554 = vmax.xlane.f32.xlu0 %v530
  %v555 = vpop.xlane.xlu0 %554
  %556 = vmax.xlane.f32.xlu0 %v531
  %v557 = vpop.xlane.xlu0 %556
  %558 = vmax.xlane.f32.xlu0 %v532
  %v559 = vpop.xlane.xlu0 %558
  %560 = vmax.xlane.f32.xlu0 %v533
  %v561 = vpop.xlane.xlu0 %560
  %562 = vmax.xlane.f32.xlu0 %v534
  %v563 = vpop.xlane.xlu0 %562
  %564 = vmax.xlane.f32.xlu0 %v535
  %v565 = vpop.xlane.xlu0 %564
  %566 = vmax.xlane.f32.xlu0 %v536
  %v567 = vpop.xlane.xlu0 %566
  %568 = vmax.xlane.f32.xlu0 %v537
  %v569 = vpop.xlane.xlu0 %568
  %v570 = vsub.f32 %v522, %v539
  %v571 = vsub.f32 %v523, %v541
  %v572 = vsub.f32 %v524, %v543
  %v573 = vsub.f32 %v525, %v545
  %v574 = vsub.f32 %v526, %v547
  %v575 = vsub.f32 %v527, %v549
  %v576 = vsub.f32 %v528, %v551
  %v577 = vsub.f32 %v529, %v553
  %v578 = vsub.f32 %v530, %v555
  %v579 = vsub.f32 %v531, %v557
  %v580 = vsub.f32 %v532, %v559
  %v581 = vsub.f32 %v533, %v561
  %v582 = vsub.f32 %v534, %v563
  %v583 = vsub.f32 %v535, %v565
  %v584 = vsub.f32 %v536, %v567
  %v585 = vsub.f32 %v537, %v569
  %v586 = vmul.f32 %v570, 1.442695
  %v587 = vpow.pop %v586
  %v588 = vmul.f32 %v571, 1.442695
  %v589 = vpow.pop %v588
  %v590 = vmul.f32 %v572, 1.442695
  %v591 = vpow.pop %v590
  %v592 = vmul.f32 %v573, 1.442695
  %v593 = vpow.pop %v592
  %v594 = vmul.f32 %v574, 1.442695
  %v595 = vpow.pop %v594
  %v596 = vmul.f32 %v575, 1.442695
  %v597 = vpow.pop %v596
  %v598 = vmul.f32 %v576, 1.442695
  %v599 = vpow.pop %v598
  %v600 = vmul.f32 %v577, 1.442695
  %v601 = vpow.pop %v600
  %v602 = vmul.f32 %v578, 1.442695
  %v603 = vpow.pop %v602
  %v604 = vmul.f32 %v579, 1.442695
  %v605 = vpow.pop %v604
  %v606 = vmul.f32 %v580, 1.442695
  %v607 = vpow.pop %v606
  %v608 = vmul.f32 %v581, 1.442695
  %v609 = vpow.pop %v608
  %v610 = vmul.f32 %v582, 1.442695
  %v611 = vpow.pop %v610
  %v612 = vmul.f32 %v583, 1.442695
  %v613 = vpow.pop %v612
  %v614 = vmul.f32 %v584, 1.442695
  %v615 = vpow.pop %v614
  %v616 = vmul.f32 %v585, 1.442695
  %v617 = vpow.pop %v616
  %618 = vadd.xlane.f32.xlu0 %v587
  %v619 = vpop.xlane.xlu0 %618
  %620 = vadd.xlane.f32.xlu0 %v589
  %v621 = vpop.xlane.xlu0 %620
  %622 = vadd.xlane.f32.xlu0 %v591
  %v623 = vpop.xlane.xlu0 %622
  %624 = vadd.xlane.f32.xlu0 %v593
  %v625 = vpop.xlane.xlu0 %624
  %626 = vadd.xlane.f32.xlu0 %v595
  %v627 = vpop.xlane.xlu0 %626
  %628 = vadd.xlane.f32.xlu0 %v597
  %v629 = vpop.xlane.xlu0 %628
  %630 = vadd.xlane.f32.xlu0 %v599
  %v631 = vpop.xlane.xlu0 %630
  %632 = vadd.xlane.f32.xlu0 %v601
  %v633 = vpop.xlane.xlu0 %632
  %634 = vadd.xlane.f32.xlu0 %v603
  %v635 = vpop.xlane.xlu0 %634
  %636 = vadd.xlane.f32.xlu0 %v605
  %v637 = vpop.xlane.xlu0 %636
  %638 = vadd.xlane.f32.xlu0 %v607
  %v639 = vpop.xlane.xlu0 %638
  %640 = vadd.xlane.f32.xlu0 %v609
  %v641 = vpop.xlane.xlu0 %640
  %642 = vadd.xlane.f32.xlu0 %v611
  %v643 = vpop.xlane.xlu0 %642
  %644 = vadd.xlane.f32.xlu0 %v613
  %v645 = vpop.xlane.xlu0 %644
  %646 = vadd.xlane.f32.xlu0 %v615
  %v647 = vpop.xlane.xlu0 %646
  %648 = vadd.xlane.f32.xlu0 %v617
  %v649 = vpop.xlane.xlu0 %648
  %v650 = vlog2.pop %v619
  %v651 = vmul.f32 %v650, 0.6931472
  %v652 = vlog2.pop %v621
  %v653 = vmul.f32 %v652, 0.6931472
  %v654 = vlog2.pop %v623
  %v655 = vmul.f32 %v654, 0.6931472
  %v656 = vlog2.pop %v625
  %v657 = vmul.f32 %v656, 0.6931472
  %v658 = vlog2.pop %v627
  %v659 = vmul.f32 %v658, 0.6931472
  %v660 = vlog2.pop %v629
  %v661 = vmul.f32 %v660, 0.6931472
  %v662 = vlog2.pop %v631
  %v663 = vmul.f32 %v662, 0.6931472
  %v664 = vlog2.pop %v633
  %v665 = vmul.f32 %v664, 0.6931472
  %v666 = vlog2.pop %v635
  %v667 = vmul.f32 %v666, 0.6931472
  %v668 = vlog2.pop %v637
  %v669 = vmul.f32 %v668, 0.6931472
  %v670 = vlog2.pop %v639
  %v671 = vmul.f32 %v670, 0.6931472
  %v672 = vlog2.pop %v641
  %v673 = vmul.f32 %v672, 0.6931472
  %v674 = vlog2.pop %v643
  %v675 = vmul.f32 %v674, 0.6931472
  %v676 = vlog2.pop %v645
  %v677 = vmul.f32 %v676, 0.6931472
  %v678 = vlog2.pop %v647
  %v679 = vmul.f32 %v678, 0.6931472
  %v680 = vlog2.pop %v649
  %v681 = vmul.f32 %v680, 0.6931472
  %v682 = vsub.f32 %v570, %v651
  %v683 = vsub.f32 %v571, %v653
  %v684 = vsub.f32 %v572, %v655
  %v685 = vsub.f32 %v573, %v657
  %v686 = vsub.f32 %v574, %v659
  %v687 = vsub.f32 %v575, %v661
  %v688 = vsub.f32 %v576, %v663
  %v689 = vsub.f32 %v577, %v665
  %v690 = vsub.f32 %v578, %v667
  %v691 = vsub.f32 %v579, %v669
  %v692 = vsub.f32 %v580, %v671
  %v693 = vsub.f32 %v581, %v673
  %v694 = vsub.f32 %v582, %v675
  %v695 = vsub.f32 %v583, %v677
  %v696 = vsub.f32 %v584, %v679
  %v697 = vsub.f32 %v585, %v681
  %698 = vst [vmem:[%s5] sm:$0xff] %v682
  %699 = vst [vmem:[%s5 + $0x8] sm:$0xff] %v683
  %700 = vst [vmem:[%s5 + $0x10] sm:$0xff] %v684
  %701 = vst [vmem:[%s5 + $0x18] sm:$0xff] %v685
  %702 = vst [vmem:[%s5 + $0x20] sm:$0xff] %v686
  %703 = vst [vmem:[%s5 + $0x28] sm:$0xff] %v687
  %704 = vst [vmem:[%s5 + $0x30] sm:$0xff] %v688
  %705 = vst [vmem:[%s5 + $0x38] sm:$0xff] %v689
  %706 = vst [vmem:[%s5 + $0x40] sm:$0xff] %v690
  %707 = vst [vmem:[%s5 + $0x48] sm:$0xff] %v691
  %708 = vst [vmem:[%s5 + $0x50] sm:$0xff] %v692
  %709 = vst [vmem:[%s5 + $0x58] sm:$0xff] %v693
  %710 = vst [vmem:[%s5 + $0x60] sm:$0xff] %v694
  %711 = vst [vmem:[%s5 + $0x68] sm:$0xff] %v695
  %712 = vst [vmem:[%s5 + $0x70] sm:$0xff] %v696
  %713 = vst [vmem:[%s5 + $0x78] sm:$0xff] %v697
  // Predicated region
  $region22: #{gcn_forward.1} parent=0 // pred_check
    _
  $region23: #{gcn_forward.1} parent=0 // pred_check_branch
    %715 = sbr.rel (0) target = $region25
  $region24: #{gcn_forward.1} parent=0 // pred_region
    _
  $region25: #{gcn_forward.1} parent=0 // pred_fallthru
    _
  // Predicated region
  $region26: #{gcn_forward.1} parent=0 // pred_check
    _
  $region27: #{gcn_forward.1} parent=0 // pred_check_branch
    %717 = sbr.rel (0) target = $region29
  $region28: #{gcn_forward.1} parent=0 // pred_region
    _
  $region29: #{gcn_forward.1} parent=0 // pred_fallthru
    _

</llo_original>
